<compile_context>
chip_gen: v5e
topology: v5e:2x2
jax: 0.10.0
libtpu: 0.0.40
codegen_flags: <defaults>
</compile_context>

<pallas_src>
import math

import jax
import jax.numpy as jnp
from jax.experimental import pallas as pl
from jax.experimental.pallas import tpu as pltpu

C = 32      # NFN channel count (hidden)
TN = 512    # lane tile: flattened positions per grid step (multiple of 128)
EPS = 1e-5


def resblock_kernel(seg_ref, x_ref, w_ref, p_ref, o_ref):
    # x_ref: (C, TN)  channels on sublanes, flattened positions on lanes
    # w_ref: (C, C)   linear weight (out, in)
    # p_ref: (C, 3)   columns = [gamma, beta, bias]
    del seg_ref  # only consumed by the index_maps
    x = x_ref[...].astype(jnp.float32)
    p = p_ref[...].astype(jnp.float32)
    gamma, beta, bias = p[:, 0:1], p[:, 1:2], p[:, 2:3]

    # per-position LayerNorm over the channel (sublane) axis
    mean = jnp.mean(x, axis=0, keepdims=True)
    var = jnp.mean((x - mean) ** 2, axis=0, keepdims=True)
    xn = (x - mean) * jax.lax.rsqrt(var + EPS)
    xn = xn * gamma + beta

    # y_col = W @ xn_col  (column form of  xn_row @ W^T), f32 MXU accumulate
    y = jnp.dot(w_ref[...], xn, preferred_element_type=jnp.float32) + bias
    y = jnp.maximum(y, 0.0)                      # TupleOp(ReLU)
    o_ref[...] = (x + y).astype(o_ref.dtype)     # residual add


def resblock_forward(weights, biases, params):
    """weights/biases: lists of (B, C, *rest) arrays; params: list of per-tensor dicts."""
    tensors = list(weights) + list(biases)
    T = len(tensors)
    B = tensors[0].shape[0]

    # Flatten each tensor to (B, C, R) (free reshape, no transpose), pad R up to
    # a multiple of TN so no tile straddles two tensors, concat along lanes.
    chunks, seg_ids, meta = [], [], []
    for t, x in enumerate(tensors):
        R = math.prod(x.shape[2:])
        Rp = pl.cdiv(R, TN) * TN
        x3 = x.reshape(B, C, R)
        chunks.append(jnp.pad(x3, ((0, 0), (0, 0), (0, Rp - R))))
        seg_ids.extend([t] * (Rp // TN))
        meta.append((x.shape, R, Rp))
    x_all = jnp.concatenate(chunks, axis=-1)            # (B, C, R_total_pad)
    seg_arr = jnp.asarray(seg_ids, dtype=jnp.int32)     # (n_tiles,)
    n_tiles = x_all.shape[-1] // TN

    w_stack = jnp.stack([params[t]["w"] for t in range(T)])              # (T, C, C)
    p_stack = jnp.stack(
        [jnp.stack([params[t]["gamma"], params[t]["beta"], params[t]["bias"]],
                   axis=-1) for t in range(T)])                          # (T, C, 3)

    n_cols = B * x_all.shape[-1]
    cost = pl.CostEstimate(
        flops=int(n_cols * (2 * C * C + 10 * C)),
        transcendentals=int(n_cols),
        bytes_accessed=int(2 * x_all.size * 4 + w_stack.size * 4 + p_stack.size * 4),
    )

    out = pl.pallas_call(
        resblock_kernel,
        out_shape=jax.ShapeDtypeStruct(x_all.shape, x_all.dtype),
        grid_spec=pltpu.PrefetchScalarGridSpec(
            num_scalar_prefetch=1,
            grid=(B, n_tiles),
            in_specs=[
                pl.BlockSpec((None, C, TN), lambda b, i, seg: (b, 0, i)),       # x tile
                pl.BlockSpec((None, C, C), lambda b, i, seg: (seg[i], 0, 0)),   # W per tensor
                pl.BlockSpec((None, C, 3), lambda b, i, seg: (seg[i], 0, 0)),   # gamma/beta/bias
            ],
            out_specs=pl.BlockSpec((None, C, TN), lambda b, i, seg: (b, 0, i)),
        ),
        compiler_params=pltpu.CompilerParams(
            dimension_semantics=("parallel", "parallel")),
        cost_estimate=cost,
    )(seg_arr, x_all, w_stack, p_stack)

    # Unpack back into the original per-tensor shapes (drop lane padding).
    outs, off = [], 0
    for (shape, R, Rp) in meta:
        outs.append(out[:, :, off:off + R].reshape(shape))
        off += Rp
    return outs[:len(weights)], outs[len(weights):]


# ---------------- pure-JAX reference for verification ----------------
def ref_apply_tensor(x, p):
    xt = jnp.moveaxis(x, 1, -1)
    mean = xt.mean(-1, keepdims=True)
    var = ((xt - mean) ** 2).mean(-1, keepdims=True)
    xn = (xt - mean) / jnp.sqrt(var + EPS) * p["gamma"] + p["beta"]
    y = jnp.maximum(xn @ p["w"].T + p["bias"], 0.0)
    return jnp.moveaxis(xt + y, -1, 1)


if __name__ == "__main__":
    key = jax.random.PRNGKey(0)
    kx, kp = jax.random.split(key)
    B = 2
    kws = jax.random.split(kx, 4)
    # a 2-layer MLP weight-space (dims 4 -> 6 -> 3), C=32 NFN channels
    weights = [
        jax.random.normal(kws[0], (B, C, 6, 4), jnp.float32),
        jax.random.normal(kws[1], (B, C, 3, 6), jnp.float32),
    ]
    biases = [
        jax.random.normal(kws[2], (B, C, 6), jnp.float32),
        jax.random.normal(kws[3], (B, C, 3), jnp.float32),
    ]

    T = len(weights) + len(biases)
    pkeys = jax.random.split(kp, 4 * T)
    it = iter(pkeys)
    params = []
    for _ in range(T):
        params.append({
            "w": jax.random.normal(next(it), (C, C), jnp.float32) / jnp.sqrt(C),
            "bias": 0.1 * jax.random.normal(next(it), (C,), jnp.float32),
            "gamma": 1.0 + 0.01 * jax.random.normal(next(it), (C,), jnp.float32),
            "beta": 0.01 * jax.random.normal(next(it), (C,), jnp.float32),
        })

    out_w, out_b = resblock_forward(weights, biases, params)
    jax.block_until_ready(out_w + out_b)

    tensors = weights + biases
    outs = out_w + out_b
    for t in range(T):
        ref = ref_apply_tensor(tensors[t], params[t])
        assert jnp.allclose(outs[t], ref, atol=1e-4, rtol=1e-4), f"mismatch on tensor {t}"

    print("KERNEL_OK")
</pallas_src>

<mosaic_0001>
module attributes {stable_mosaic.version = 11 : i64} {
  func.func @resblock_kernel(%arg0: i32, %arg1: i32, %arg2: memref<4xi32, #tpu.memory_space<smem>>, %arg3: memref<1x32x512xf32, #tpu.memory_space<vmem>>, %arg4: memref<1x32x32xf32, #tpu.memory_space<vmem>>, %arg5: memref<1x32x3xf32, #tpu.memory_space<vmem>>, %arg6: memref<1x32x512xf32, #tpu.memory_space<vmem>>) attributes {dimension_semantics = [#tpu.dimension_semantics<parallel>, #tpu.dimension_semantics<parallel>], iteration_bounds = array<i64: 2, 4>, scalar_prefetch = 1 : i64, scratch_operands = 0 : i64, tpu.core_type = #tpu.core_type<tc>, window_params = [{transform_indices = @transform_0, window_bounds = array<i64: 1, 32, 512>}, {transform_indices = @transform_1, window_bounds = array<i64: 1, 32, 32>}, {transform_indices = @transform_2, window_bounds = array<i64: 1, 32, 3>}, {transform_indices = @transform_3, window_bounds = array<i64: 1, 32, 512>}]} {
    %c0 = arith.constant 0 : index
    %c0_0 = arith.constant 0 : index
    %c0_1 = arith.constant 0 : index
    %0 = vector.load %arg3[%c0, %c0_0, %c0_1] : memref<1x32x512xf32, #tpu.memory_space<vmem>>, vector<1x32x512xf32>
    %1 = vector.shape_cast %0 : vector<1x32x512xf32> to vector<32x512xf32>
    %c0_2 = arith.constant 0 : index
    %c0_3 = arith.constant 0 : index
    %c0_4 = arith.constant 0 : index
    %2 = vector.load %arg5[%c0_2, %c0_3, %c0_4] : memref<1x32x3xf32, #tpu.memory_space<vmem>>, vector<1x32x3xf32>
    %3 = vector.shape_cast %2 : vector<1x32x3xf32> to vector<32x3xf32>
    %4 = vector.extract_strided_slice %3 {offsets = [0, 0], sizes = [32, 1], strides = [1, 1]} : vector<32x3xf32> to vector<32x1xf32>
    %5 = vector.extract_strided_slice %3 {offsets = [0, 1], sizes = [32, 1], strides = [1, 1]} : vector<32x3xf32> to vector<32x1xf32>
    %6 = vector.extract_strided_slice %3 {offsets = [0, 2], sizes = [32, 1], strides = [1, 1]} : vector<32x3xf32> to vector<32x1xf32>
    %cst = arith.constant dense<0.000000e+00> : vector<512xf32>
    %7 = vector.multi_reduction <add>, %1, %cst [0] : vector<32x512xf32> to vector<512xf32>
    %8 = vector.shape_cast %7 : vector<512xf32> to vector<1x512xf32>
    %cst_5 = arith.constant 3.200000e+01 : f32
    %9 = vector.broadcast %cst_5 : f32 to vector<1x512xf32>
    %10 = arith.divf %8, %9 : vector<1x512xf32>
    %11 = vector.broadcast %10 : vector<1x512xf32> to vector<32x512xf32>
    %12 = arith.subf %1, %11 : vector<32x512xf32>
    %13 = arith.mulf %12, %12 : vector<32x512xf32>
    %cst_6 = arith.constant dense<0.000000e+00> : vector<512xf32>
    %14 = vector.multi_reduction <add>, %13, %cst_6 [0] : vector<32x512xf32> to vector<512xf32>
    %15 = vector.shape_cast %14 : vector<512xf32> to vector<1x512xf32>
    %cst_7 = arith.constant 3.200000e+01 : f32
    %16 = vector.broadcast %cst_7 : f32 to vector<1x512xf32>
    %17 = arith.divf %15, %16 : vector<1x512xf32>
    %18 = vector.broadcast %10 : vector<1x512xf32> to vector<32x512xf32>
    %19 = arith.subf %1, %18 : vector<32x512xf32>
    %cst_8 = arith.constant 9.99999974E-6 : f32
    %20 = vector.broadcast %cst_8 : f32 to vector<1x512xf32>
    %21 = arith.addf %17, %20 : vector<1x512xf32>
    %22 = math.rsqrt %21 : vector<1x512xf32>
    %23 = vector.broadcast %22 : vector<1x512xf32> to vector<32x512xf32>
    %24 = arith.mulf %19, %23 : vector<32x512xf32>
    %25 = vector.broadcast %4 : vector<32x1xf32> to vector<32x512xf32>
    %26 = arith.mulf %24, %25 : vector<32x512xf32>
    %27 = vector.broadcast %5 : vector<32x1xf32> to vector<32x512xf32>
    %28 = arith.addf %26, %27 : vector<32x512xf32>
    %c0_9 = arith.constant 0 : index
    %c0_10 = arith.constant 0 : index
    %c0_11 = arith.constant 0 : index
    %29 = vector.load %arg4[%c0_9, %c0_10, %c0_11] : memref<1x32x32xf32, #tpu.memory_space<vmem>>, vector<1x32x32xf32>
    %30 = vector.shape_cast %29 : vector<1x32x32xf32> to vector<32x32xf32>
    %cst_12 = arith.constant dense<0.000000e+00> : vector<32x512xf32>
    %31 = tpu.matmul %30, %28, %cst_12 {dimension_numbers = #tpu.dot_dimension_numbers<[1], [0], [0], [1], [0, 0, 1, 1], [], []>} : vector<32x32xf32>, vector<32x512xf32>, vector<32x512xf32> -> vector<32x512xf32>
    %32 = vector.broadcast %6 : vector<32x1xf32> to vector<32x512xf32>
    %33 = arith.addf %31, %32 : vector<32x512xf32>
    %cst_13 = arith.constant 0.000000e+00 : f32
    %34 = vector.broadcast %cst_13 : f32 to vector<32x512xf32>
    %35 = arith.maximumf %33, %34 : vector<32x512xf32>
    %36 = arith.addf %1, %35 : vector<32x512xf32>
    %c0_14 = arith.constant 0 : index
    %c0_15 = arith.constant 0 : index
    %c0_16 = arith.constant 0 : index
    %37 = vector.load %arg6[%c0_14, %c0_15, %c0_16] : memref<1x32x512xf32, #tpu.memory_space<vmem>>, vector<1x32x512xf32>
    %38 = vector.shape_cast %37 : vector<1x32x512xf32> to vector<32x512xf32>
    %39 = vector.shape_cast %36 : vector<32x512xf32> to vector<1x32x512xf32>
    tpu.vector_store %arg6[%c0_14, %c0_15, %c0_16], %39 {strides = array<i32>} : memref<1x32x512xf32, #tpu.memory_space<vmem>>, vector<1x32x512xf32>,
    return
  }
  func.func @transform_0(%arg0: i32, %arg1: i32, %arg2: memref<4xi32, #tpu.memory_space<smem>>) -> (i32, i32, i32) {
    %c0_i32 = arith.constant 0 : i32
    %c0_i32_0 = arith.constant 0 : i32
    return %arg0, %c0_i32, %arg1 : i32, i32, i32
  }
  func.func @transform_1(%arg0: i32, %arg1: i32, %arg2: memref<4xi32, #tpu.memory_space<smem>>) -> (i32, i32, i32) {
    %0 = arith.index_cast %arg1 : i32 to index
    %1 = memref.load %arg2[%0] : memref<4xi32, #tpu.memory_space<smem>>
    %c0_i32 = arith.constant 0 : i32
    %c0_i32_0 = arith.constant 0 : i32
    %c0_i32_1 = arith.constant 0 : i32
    return %1, %c0_i32, %c0_i32_0 : i32, i32, i32
  }
  func.func @transform_2(%arg0: i32, %arg1: i32, %arg2: memref<4xi32, #tpu.memory_space<smem>>) -> (i32, i32, i32) {
    %0 = arith.index_cast %arg1 : i32 to index
    %1 = memref.load %arg2[%0] : memref<4xi32, #tpu.memory_space<smem>>
    %c0_i32 = arith.constant 0 : i32
    %c0_i32_0 = arith.constant 0 : i32
    %c0_i32_1 = arith.constant 0 : i32
    return %1, %c0_i32, %c0_i32_0 : i32, i32, i32
  }
  func.func @transform_3(%arg0: i32, %arg1: i32, %arg2: memref<4xi32, #tpu.memory_space<smem>>) -> (i32, i32, i32) {
    %c0_i32 = arith.constant 0 : i32
    %c0_i32_0 = arith.constant 0 : i32
    return %arg0, %c0_i32, %arg1 : i32, i32, i32
  }
}

</mosaic_0001>

<llo_original>
// kernel: tpu_custom_call.1
$region0: #{tpu_custom_call.1}
  #allocation0 [shape = 'u32[]', space=smem, size = 0x4, offset = 0x4, fixed_abs, tag = 'smem constant byte address 0x4 - core index']
  #allocation1 [shape = 'u32[72,128]{1,0:T(1,128)}', space=vmem, size = 0x9000, scoped, tag = 'internal scratch']
  #allocation2 [shape = 's32[1]{0}', space=sflag, size = 0x4, scoped, tag = 'scoped memory for tpu_custom_call.1']
  #allocation3 [shape = 'u8[512]{0}', space=smem, size = 0x200, scoped, tag = 'prefetched SMEM operand 0']
  %s0 = inlined_call_operand.vmem [shape: s32[4], index: 0, kind: input, shape index: {}]
  %s1 = inlined_call_operand.hbm [shape: f32[2,32,2048], index: 1, kind: input, shape index: {}]
  %s2 = inlined_call_operand.vmem [shape: f32[4,32,32], index: 2, kind: input, shape index: {}]
  %s3 = inlined_call_operand.vmem [shape: f32[4,32,3], index: 3, kind: input, shape index: {}]
  %s4 = inlined_call_operand.hbm [shape: f32[2,32,2048], index: 4, kind: output, shape index: {}]
  %s5 = sld [smem:[#allocation0]]
  $region49: #{tpu_custom_call.1} parent=0
    _
  %s7 = ssub.s32 1, %s5
  %s8 = scalar_select 0, %s7, %s5
  %s10 = sshll.u32 %s0, 4
  %s11 = int_to_ptr.vmem [resolvable:$true] %s10
  %13 = dma.vmem_to_smem %s11, 16, [#allocation3], [#allocation2]
  %15 = dma.done [#allocation2], 16
  %16 = sfence
  $region1: #{tpu_custom_call.1} parent=0
    #allocation4 [shape = 'u8[131072]{0}', space=vmem, size = 0x20000, scoped, tag = 'input window, operand 1']
    #allocation5 [shape = 's32[2]{0}', space=sflag, size = 0x8, scoped, tag = 'scoped memory for tpu_custom_call.1']
    #allocation6 [shape = 's32[2]{0}', space=sflag, size = 0x8, scoped, tag = 'scoped memory for tpu_custom_call.1']
    #allocation7 [shape = 'u8[131072]{0}', space=vmem, size = 0x20000, scoped, tag = 'output window, operand 0']
    %17 = vsyncpa [#allocation5], 0
    %s18 = scalar_lea.sflag [#allocation5], 1
    %19 = vsyncpa %s18, 0
    %20 = vsyncpa [#allocation6], 0
    %s21 = scalar_lea.sflag [#allocation6], 1
    %22 = vsyncpa %s21, 0
    loop: start=0, step=1, limit=10
    $region2: #{tpu_custom_call.1} parent=1 // loop_pre_header
      _
    $region3: #{tpu_custom_call.1} parent=1 // loop_header
      %s24 = sphi 0, %s28
      %p25 = scmp.ge.s32.totalorder %s24, 10
      %s31 = sphi 0, %s43
      %s32 = sphi 0, %s39
      %s33 = sphi 0, %s31
      %s34 = sphi 0, %s32
      %s35 = sphi 0, %s33
      %s36 = sphi 0, %s34
      %s48 = sphi 0, %s50
      %s51 = sphi 0, %s48
      %s52 = sphi 0, %s51
      %s68 = sphi 0, %s52
      %s76 = sphi 0, %s78
      %s79 = sphi 0, %s76
      %s80 = sphi 0, %s79
      %s96 = sphi 0, %s80
      %s104 = sphi 0, %s106
      %s107 = sphi 0, %s104
      %s108 = sphi 0, %s107
      %s124 = sphi 0, %s108
      %s132 = sphi 0, %s134
      %s135 = sphi 0, %s132
      %s136 = sphi 0, %s135
      %s152 = sphi 0, %s136
    $region4: #{tpu_custom_call.1} parent=1 // loop_header_branch
      %27 = sbr.rel (%p25) target = $region8
    $region5: #{tpu_custom_call.1} parent=1 // loop_body
      %s29 = ssub.s32 %s24, 1
      %s30 = ssub.s32 %s24, 2
      %s37 = sadd.s32 1, %s32
      %p38 = scmp.ge.s32.totalorder %s37, 4
      %s39 = scalar_select %p38, 0, %s37
      %s40 = sadd.s32 1, %s31
      %s41 = scalar_select %p38, %s40, %s31
      %p42 = scmp.ge.s32.totalorder %s41, 2
      %s43 = scalar_select %p42, 0, %s41
      %s44 = ssub.s32 %s31, %s43
      %s45 = ssub.s32 %s32, %s39
      %s46 = sor.u32 %s44, %s45
      %p47 = scmp.eq.s32.totalorder %s46, 0
      %s49 = sadd.s32 %s48, 1
      %s50 = scalar_select %p47, %s48, %s49
      %p53 = pneg %p47
      %p54 = scmp.eq.s32.totalorder %s24, 7
      %p55 = por %p53, %p54
      %p56 = scmp.ne.s32.totalorder %s48, %s51
      %p57 = scmp.eq.s32.totalorder %s24, 0
      %p58 = por %p56, %p57
      %p59 = scmp.ne.s32.totalorder %s48, %s51
      %p60 = scmp.eq.s32.totalorder %s29, 7
      %p61 = por %p59, %p60
      %p62 = scmp.ne.s32.totalorder %s51, %s52
      %p63 = scmp.eq.s32.totalorder %s29, 0
      %p64 = por %p62, %p63
      %p65 = scmp.ne.s32.totalorder %s51, %s52
      %p66 = scmp.eq.s32.totalorder %s30, 7
      %p67 = por %p65, %p66
      %p69 = scmp.ne.s32.totalorder %s52, %s68
      %p70 = scmp.eq.s32.totalorder %s30, 0
      %p71 = por %p69, %p70
      %s72 = sld [smem:[#allocation3 + %s32]]
      %s73 = sld [smem:[#allocation3 + %s39]]
      %s74 = ssub.s32 %s72, %s73
      %p75 = scmp.eq.s32.totalorder %s74, 0
      %s77 = sadd.s32 %s76, 1
      %s78 = scalar_select %p75, %s76, %s77
      %p81 = pneg %p75
      %p82 = scmp.eq.s32.totalorder %s24, 7
      %p83 = por %p81, %p82
      %p84 = scmp.ne.s32.totalorder %s76, %s79
      %p85 = scmp.eq.s32.totalorder %s24, 0
      %p86 = por %p84, %p85
      %p87 = scmp.ne.s32.totalorder %s76, %s79
      %p88 = scmp.eq.s32.totalorder %s29, 7
      %p89 = por %p87, %p88
      %p90 = scmp.ne.s32.totalorder %s79, %s80
      %p91 = scmp.eq.s32.totalorder %s29, 0
      %p92 = por %p90, %p91
      %p93 = scmp.ne.s32.totalorder %s79, %s80
      %p94 = scmp.eq.s32.totalorder %s30, 7
      %p95 = por %p93, %p94
      %p97 = scmp.ne.s32.totalorder %s80, %s96
      %p98 = scmp.eq.s32.totalorder %s30, 0
      %p99 = por %p97, %p98
      %s100 = sld [smem:[#allocation3 + %s32]]
      %s101 = sld [smem:[#allocation3 + %s39]]
      %s102 = ssub.s32 %s100, %s101
      %p103 = scmp.eq.s32.totalorder %s102, 0
      %s105 = sadd.s32 %s104, 1
      %s106 = scalar_select %p103, %s104, %s105
      %p109 = pneg %p103
      %p110 = scmp.eq.s32.totalorder %s24, 7
      %p111 = por %p109, %p110
      %p112 = scmp.ne.s32.totalorder %s104, %s107
      %p113 = scmp.eq.s32.totalorder %s24, 0
      %p114 = por %p112, %p113
      %p115 = scmp.ne.s32.totalorder %s104, %s107
      %p116 = scmp.eq.s32.totalorder %s29, 7
      %p117 = por %p115, %p116
      %p118 = scmp.ne.s32.totalorder %s107, %s108
      %p119 = scmp.eq.s32.totalorder %s29, 0
      %p120 = por %p118, %p119
      %p121 = scmp.ne.s32.totalorder %s107, %s108
      %p122 = scmp.eq.s32.totalorder %s30, 7
      %p123 = por %p121, %p122
      %p125 = scmp.ne.s32.totalorder %s108, %s124
      %p126 = scmp.eq.s32.totalorder %s30, 0
      %p127 = por %p125, %p126
      %s128 = ssub.s32 %s31, %s43
      %s129 = ssub.s32 %s32, %s39
      %s130 = sor.u32 %s128, %s129
      %p131 = scmp.eq.s32.totalorder %s130, 0
      %s133 = sadd.s32 %s132, 1
      %s134 = scalar_select %p131, %s132, %s133
      %p137 = pneg %p131
      %p138 = scmp.eq.s32.totalorder %s24, 7
      %p139 = por %p137, %p138
      %p140 = scmp.ne.s32.totalorder %s132, %s135
      %p141 = scmp.eq.s32.totalorder %s24, 0
      %p142 = por %p140, %p141
      %p143 = scmp.ne.s32.totalorder %s132, %s135
      %p144 = scmp.eq.s32.totalorder %s29, 7
      %p145 = por %p143, %p144
      %p146 = scmp.ne.s32.totalorder %s135, %s136
      %p147 = scmp.eq.s32.totalorder %s29, 0
      %p148 = por %p146, %p147
      %p149 = scmp.ne.s32.totalorder %s135, %s136
      %p150 = scmp.eq.s32.totalorder %s30, 7
      %p151 = por %p149, %p150
      %p153 = scmp.ne.s32.totalorder %s136, %s152
      %p154 = scmp.eq.s32.totalorder %s30, 0
      %p155 = por %p153, %p154
      %p156 = scmp.le.s32.totalorder 1, %s24
      %p157 = scmp.lt.s32.totalorder %s24, 9
      %p158 = pnand %p156, %p157
      %p159 = pneg %p158
      // Predicated region
      $region9: #{tpu_custom_call.1} parent=5 // pred_check
        _
      $region10: #{tpu_custom_call.1} parent=5 // pred_check_branch
        %161 = sbr.rel (%p158) target = $region12
      $region11: #{tpu_custom_call.1} parent=5 // pred_region
        %s162 = ssub.s32 %s24, 1
      $region12: #{tpu_custom_call.1} parent=5 // pred_fallthru
        _
      %p163 = scmp.lt.s32.totalorder %s24, 8
      // Predicated region
      $region13: #{tpu_custom_call.1} parent=5 // pred_check
        %p164 = pneg %p163
      $region14: #{tpu_custom_call.1} parent=5 // pred_check_branch
        %166 = sbr.rel (%p164) target = $region16
      $region15: #{tpu_custom_call.1} parent=5 // pred_region
        // Predicated region
        $region17: #{tpu_custom_call.1} parent=15 // pred_check
          %p167 = pneg %p58
        $region18: #{tpu_custom_call.1} parent=15 // pred_check_branch
          %169 = sbr.rel (%p167) target = $region20
        $region19: #{tpu_custom_call.1} parent=15 // pred_region
          %s170 = sand.u32 %s48, 1
          %s171 = scalar_lea.sflag [#allocation5], %s170
          %s172 = sand.u32 %s48, 1
          %s173 = smul.addr %s172, 128
          %s174 = scalar_lea.vmem [#allocation4], %s173
          %s175 = smul.u32 4, %s32
          %177 = vsyncadd %s171, 0
          %s178 = smul.addr %s31, 64
          %s179 = sadd.s32 %s175, %s178
          %s180 = smul.addr %s179, 8
          %s181 = scalar_lea.hbm %s1, %s180
          %s182 = sshll.u32 %s181, 4
          %s183 = int_to_ptr.hbm [resolvable:$true] %s182
          %s184 = sshll.u32 %s174, 4
          %s185 = int_to_ptr.vmem [resolvable:$true] %s184
          %190 = dma.hbm_to_vmem [thread:$0]  %s183, 2048, %s185, %s171, 2048, 512, 32
        $region20: #{tpu_custom_call.1} parent=15 // pred_fallthru
          _
        // Predicated region
        $region21: #{tpu_custom_call.1} parent=15 // pred_check
          %p191 = pneg %p86
        $region22: #{tpu_custom_call.1} parent=15 // pred_check_branch
          %193 = sbr.rel (%p191) target = $region24
        $region23: #{tpu_custom_call.1} parent=15 // pred_region
          %s194 = sld [smem:[#allocation3 + %s32]]
          %p195 = scmp.lt.s32.totalorder %s194, 3
          %s196 = scalar_select %p195, %s194, 3
          %s197 = smul.addr %s196, 4
          %s198 = smul.addr %s197, 8
          %s199 = scalar_lea.vmem %s2, %s198
          %s200 = sld [smem:[#allocation3 + %s32]]
        $region24: #{tpu_custom_call.1} parent=15 // pred_fallthru
          _
        // Predicated region
        $region25: #{tpu_custom_call.1} parent=15 // pred_check
          %p201 = pneg %p114
        $region26: #{tpu_custom_call.1} parent=15 // pred_check_branch
          %203 = sbr.rel (%p201) target = $region28
        $region27: #{tpu_custom_call.1} parent=15 // pred_region
          %s204 = sld [smem:[#allocation3 + %s32]]
          %p205 = scmp.lt.s32.totalorder %s204, 3
          %s206 = scalar_select %p205, %s204, 3
          %s207 = smul.addr %s206, 4
          %s208 = smul.addr %s207, 8
          %s209 = scalar_lea.vmem %s3, %s208
          %s210 = sld [smem:[#allocation3 + %s32]]
        $region28: #{tpu_custom_call.1} parent=15 // pred_fallthru
          _
      $region16: #{tpu_custom_call.1} parent=5 // pred_fallthru
        _
      %p211 = scmp.le.s32.totalorder 1, %s24
      %p212 = scmp.lt.s32.totalorder %s24, 9
      %p213 = pnand %p211, %p212
      %p214 = pneg %p213
      // Predicated region
      $region29: #{tpu_custom_call.1} parent=5 // pred_check
        _
      $region30: #{tpu_custom_call.1} parent=5 // pred_check_branch
        %216 = sbr.rel (%p213) target = $region32
      $region31: #{tpu_custom_call.1} parent=5 // pred_region
        %s217 = ssub.s32 %s24, 1
        %s218 = sand.u32 %s51, 1
        %s219 = scalar_lea.sflag [#allocation5], %s218
        %s220 = sand.u32 %s51, 1
        %s221 = smul.addr %s220, 128
        %s222 = scalar_lea.vmem [#allocation4], %s221
        // Predicated region
        $region33: #{tpu_custom_call.1} parent=31 // pred_check
          %p223 = pneg %p64
        $region34: #{tpu_custom_call.1} parent=31 // pred_check_branch
          %225 = sbr.rel (%p223) target = $region36
        $region35: #{tpu_custom_call.1} parent=31 // pred_region
          %227 = dma.done %s219, 2048
        $region36: #{tpu_custom_call.1} parent=31 // pred_fallthru
          _
        %s228 = sand.u32 %s51, 1
        %s229 = scalar_lea.sflag [#allocation5], %s228
        %s230 = sand.u32 %s51, 1
        %s231 = smul.addr %s230, 128
        %s232 = scalar_lea.vmem [#allocation4], %s231
        %p233 = pneg %p64
        %p234 = pneg %p61
        %s235 = sld [smem:[#allocation3 + %s34]]
        %p236 = scmp.lt.s32.totalorder %s235, 3
        %s237 = scalar_select %p236, %s235, 3
        %s238 = smul.addr %s237, 4
        %s239 = smul.addr %s238, 8
        %s240 = scalar_lea.vmem %s2, %s239
        %p241 = pneg %p92
        %p242 = pneg %p89
        %s243 = sld [smem:[#allocation3 + %s34]]
        %p244 = scmp.lt.s32.totalorder %s243, 3
        %s245 = scalar_select %p244, %s243, 3
        %s246 = smul.addr %s245, 4
        %s247 = smul.addr %s246, 8
        %s248 = scalar_lea.vmem %s3, %s247
        %p249 = pneg %p120
        %p250 = pneg %p117
        %p251 = pneg %p148
        %p252 = pneg %p145
        %s253 = sand.u32 %s135, 1
        %s254 = scalar_lea.sflag [#allocation6], %s253
        %s255 = sand.u32 %s135, 1
        %s256 = smul.addr %s255, 128
        %s257 = scalar_lea.vmem [#allocation7], %s256
        %s258 = smul.u32 4, %s34
        %s259 = sld [smem:[#allocation3 + %s34]]
        %p260 = scmp.lt.s32.totalorder %s259, 3
        %s261 = scalar_select %p260, %s259, 3
        %s262 = smul.addr %s261, 4
        %s263 = smul.addr %s262, 8
        %s264 = scalar_lea.vmem %s2, %s263
        %s265 = sld [smem:[#allocation3 + %s34]]
        %s266 = sld [smem:[#allocation3 + %s34]]
        %p267 = scmp.lt.s32.totalorder %s266, 3
        %s268 = scalar_select %p267, %s266, 3
        %s269 = smul.addr %s268, 4
        %s270 = smul.addr %s269, 8
        %s271 = scalar_lea.vmem %s3, %s270
        %s272 = sld [smem:[#allocation3 + %s34]]
        %s273 = smul.u32 4, %s34
        %v274 = vld [vmem:[%s222] sm:$0xff]
        %v275 = vld [vmem:[%s222 + $0x8] sm:$0xff]
        %v276 = vld [vmem:[%s222 + $0x10] sm:$0xff]
        %v277 = vld [vmem:[%s222 + $0x18] sm:$0xff]
        %v278 = vld [vmem:[%s222 + $0x20] sm:$0xff]
        %v279 = vld [vmem:[%s222 + $0x28] sm:$0xff]
        %v280 = vld [vmem:[%s222 + $0x30] sm:$0xff]
        %v281 = vld [vmem:[%s222 + $0x38] sm:$0xff]
        %v282 = vld [vmem:[%s222 + $0x40] sm:$0xff]
        %v283 = vld [vmem:[%s222 + $0x48] sm:$0xff]
        %v284 = vld [vmem:[%s222 + $0x50] sm:$0xff]
        %v285 = vld [vmem:[%s222 + $0x58] sm:$0xff]
        %v286 = vld [vmem:[%s222 + $0x60] sm:$0xff]
        %v287 = vld [vmem:[%s222 + $0x68] sm:$0xff]
        %v288 = vld [vmem:[%s222 + $0x70] sm:$0xff]
        %v289 = vld [vmem:[%s222 + $0x78] sm:$0xff]
        %v290 = vld [vmem:[%s271] sm:$0xff]
        %v291 = vld [vmem:[%s271 + $0x8] sm:$0xff]
        %v292 = vld [vmem:[%s271 + $0x10] sm:$0xff]
        %v293 = vld [vmem:[%s271 + $0x18] sm:$0xff]
        %v294 = vadd.f32 %v274, %v278
        %v295 = vadd.f32 %v294, %v282
        %v296 = vadd.f32 %v295, %v286
        %v297 = vrot.slane %v296, 4
        %v298 = vadd.f32 %v296, %v297
        %v299 = vrot.slane %v298, 2
        %v300 = vadd.f32 %v298, %v299
        %v301 = vrot.slane %v300, 1
        %v302 = vadd.f32 %v300, %v301
        %v303 = vadd.f32 %v275, %v279
        %v304 = vadd.f32 %v303, %v283
        %v305 = vadd.f32 %v304, %v287
        %v306 = vrot.slane %v305, 4
        %v307 = vadd.f32 %v305, %v306
        %v308 = vrot.slane %v307, 2
        %v309 = vadd.f32 %v307, %v308
        %v310 = vrot.slane %v309, 1
        %v311 = vadd.f32 %v309, %v310
        %v312 = vadd.f32 %v276, %v280
        %v313 = vadd.f32 %v312, %v284
        %v314 = vadd.f32 %v313, %v288
        %v315 = vrot.slane %v314, 4
        %v316 = vadd.f32 %v314, %v315
        %v317 = vrot.slane %v316, 2
        %v318 = vadd.f32 %v316, %v317
        %v319 = vrot.slane %v318, 1
        %v320 = vadd.f32 %v318, %v319
        %v321 = vadd.f32 %v277, %v281
        %v322 = vadd.f32 %v321, %v285
        %v323 = vadd.f32 %v322, %v289
        %v324 = vrot.slane %v323, 4
        %v325 = vadd.f32 %v323, %v324
        %v326 = vrot.slane %v325, 2
        %v327 = vadd.f32 %v325, %v326
        %v328 = vrot.slane %v327, 1
        %v329 = vadd.f32 %v327, %v328
        %v330 = vrcp.pop 32.0
        %v331 = vmul.f32 32.0, %v330
        %v332 = vsub.f32 1.0, %v331
        %v333 = vmul.f32 %v330, %v332
        %v334 = vadd.f32 %v330, %v333
        %vm335 = vweird.f32 %v330
        %v336 = vsel %vm335, %v330, %v334
        %v337 = vmul.f32 %v302, %v336
        %v338 = vmul.f32 %v311, %v336
        %v339 = vmul.f32 %v320, %v336
        %v340 = vmul.f32 %v329, %v336
        %v341 = vsub.f32 %v274, %v337
        %v342 = vsub.f32 %v275, %v338
        %v343 = vsub.f32 %v276, %v339
        %v344 = vsub.f32 %v277, %v340
        %v345 = vsub.f32 %v278, %v337
        %v346 = vsub.f32 %v279, %v338
        %v347 = vsub.f32 %v280, %v339
        %v348 = vsub.f32 %v281, %v340
        %v349 = vsub.f32 %v282, %v337
        %v350 = vsub.f32 %v283, %v338
        %v351 = vsub.f32 %v284, %v339
        %v352 = vsub.f32 %v285, %v340
        %v353 = vsub.f32 %v286, %v337
        %v354 = vsub.f32 %v287, %v338
        %v355 = vsub.f32 %v288, %v339
        %v356 = vsub.f32 %v289, %v340
        %v357 = vmul.f32 %v341, %v341
        %v358 = vmul.f32 %v342, %v342
        %v359 = vmul.f32 %v343, %v343
        %v360 = vmul.f32 %v344, %v344
        %v361 = vmul.f32 %v345, %v345
        %v362 = vmul.f32 %v346, %v346
        %v363 = vmul.f32 %v347, %v347
        %v364 = vmul.f32 %v348, %v348
        %v365 = vmul.f32 %v349, %v349
        %v366 = vmul.f32 %v350, %v350
        %v367 = vmul.f32 %v351, %v351
        %v368 = vmul.f32 %v352, %v352
        %v369 = vmul.f32 %v353, %v353
        %v370 = vmul.f32 %v354, %v354
        %v371 = vmul.f32 %v355, %v355
        %v372 = vmul.f32 %v356, %v356
        %v373 = vadd.f32 %v357, %v361
        %v374 = vadd.f32 %v373, %v365
        %v375 = vadd.f32 %v374, %v369
        %v376 = vrot.slane %v375, 4
        %v377 = vadd.f32 %v375, %v376
        %v378 = vrot.slane %v377, 2
        %v379 = vadd.f32 %v377, %v378
        %v380 = vrot.slane %v379, 1
        %v381 = vadd.f32 %v379, %v380
        %v382 = vadd.f32 %v358, %v362
        %v383 = vadd.f32 %v382, %v366
        %v384 = vadd.f32 %v383, %v370
        %v385 = vrot.slane %v384, 4
        %v386 = vadd.f32 %v384, %v385
        %v387 = vrot.slane %v386, 2
        %v388 = vadd.f32 %v386, %v387
        %v389 = vrot.slane %v388, 1
        %v390 = vadd.f32 %v388, %v389
        %v391 = vadd.f32 %v359, %v363
        %v392 = vadd.f32 %v391, %v367
        %v393 = vadd.f32 %v392, %v371
        %v394 = vrot.slane %v393, 4
        %v395 = vadd.f32 %v393, %v394
        %v396 = vrot.slane %v395, 2
        %v397 = vadd.f32 %v395, %v396
        %v398 = vrot.slane %v397, 1
        %v399 = vadd.f32 %v397, %v398
        %v400 = vadd.f32 %v360, %v364
        %v401 = vadd.f32 %v400, %v368
        %v402 = vadd.f32 %v401, %v372
        %v403 = vrot.slane %v402, 4
        %v404 = vadd.f32 %v402, %v403
        %v405 = vrot.slane %v404, 2
        %v406 = vadd.f32 %v404, %v405
        %v407 = vrot.slane %v406, 1
        %v408 = vadd.f32 %v406, %v407
        %v409 = vmul.f32 %v381, %v336
        %v410 = vmul.f32 %v390, %v336
        %v411 = vmul.f32 %v399, %v336
        %v412 = vmul.f32 %v408, %v336
        %v413 = vadd.f32 %v409, 1e-05
        %v414 = vadd.f32 %v410, 1e-05
        %v415 = vadd.f32 %v411, 1e-05
        %v416 = vadd.f32 %v412, 1e-05
        %v417 = vrsqrt.pop %v413
        %v418 = vmul.f32 %v417, %v413
        %v419 = vmul.f32 %v418, %v417
        %v420 = vmul.f32 0.5, %v419
        %v421 = vsub.f32 1.5, %v420
        %v422 = vmul.f32 %v417, %v421
        %vm423 = vweird.f32 %v413
        %vm424 = vweird.f32 %v417
        %vm425 = vmor %vm423, %vm424
        %v426 = vsel %vm425, %v417, %v422
        %v427 = vrsqrt.pop %v414
        %v428 = vmul.f32 %v427, %v414
        %v429 = vmul.f32 %v428, %v427
        %v430 = vmul.f32 0.5, %v429
        %v431 = vsub.f32 1.5, %v430
        %v432 = vmul.f32 %v427, %v431
        %vm433 = vweird.f32 %v414
        %vm434 = vweird.f32 %v427
        %vm435 = vmor %vm433, %vm434
        %v436 = vsel %vm435, %v427, %v432
        %v437 = vrsqrt.pop %v415
        %v438 = vmul.f32 %v437, %v415
        %v439 = vmul.f32 %v438, %v437
        %v440 = vmul.f32 0.5, %v439
        %v441 = vsub.f32 1.5, %v440
        %v442 = vmul.f32 %v437, %v441
        %vm443 = vweird.f32 %v415
        %vm444 = vweird.f32 %v437
        %vm445 = vmor %vm443, %vm444
        %v446 = vsel %vm445, %v437, %v442
        %v447 = vrsqrt.pop %v416
        %v448 = vmul.f32 %v447, %v416
        %v449 = vmul.f32 %v448, %v447
        %v450 = vmul.f32 0.5, %v449
        %v451 = vsub.f32 1.5, %v450
        %v452 = vmul.f32 %v447, %v451
        %vm453 = vweird.f32 %v416
        %vm454 = vweird.f32 %v447
        %vm455 = vmor %vm453, %vm454
        %v456 = vsel %vm455, %v447, %v452
        %v457 = vmul.f32 %v341, %v426
        %v458 = vmul.f32 %v342, %v436
        %v459 = vmul.f32 %v343, %v446
        %v460 = vmul.f32 %v344, %v456
        %v461 = vmul.f32 %v345, %v426
        %v462 = vmul.f32 %v346, %v436
        %v463 = vmul.f32 %v347, %v446
        %v464 = vmul.f32 %v348, %v456
        %v465 = vmul.f32 %v349, %v426
        %v466 = vmul.f32 %v350, %v436
        %v467 = vmul.f32 %v351, %v446
        %v468 = vmul.f32 %v352, %v456
        %v469 = vmul.f32 %v353, %v426
        %v470 = vmul.f32 %v354, %v436
        %v471 = vmul.f32 %v355, %v446
        %v472 = vmul.f32 %v356, %v456
        %474 = vset.pattern.permute.xlu0 0
        %475 = vperm.xlu0 %474, %v290
        %v476 = vpop.permute.xlu0 %475
        %479 = vset.pattern.permute.xlu0 0
        %480 = vperm.xlu0 %479, %v291
        %v481 = vpop.permute.xlu0 %480
        %484 = vset.pattern.permute.xlu0 0
        %485 = vperm.xlu0 %484, %v292
        %v486 = vpop.permute.xlu0 %485
        %489 = vset.pattern.permute.xlu0 0
        %490 = vperm.xlu0 %489, %v293
        %v491 = vpop.permute.xlu0 %490
        %v493 = vmul.f32 %v457, %v476
        %v494 = vmul.f32 %v458, %v476
        %v495 = vmul.f32 %v459, %v476
        %v496 = vmul.f32 %v460, %v476
        %v497 = vmul.f32 %v461, %v481
        %v498 = vmul.f32 %v462, %v481
        %v499 = vmul.f32 %v463, %v481
        %v500 = vmul.f32 %v464, %v481
        %v501 = vmul.f32 %v465, %v486
        %v502 = vmul.f32 %v466, %v486
        %v503 = vmul.f32 %v467, %v486
        %v504 = vmul.f32 %v468, %v486
        %v505 = vmul.f32 %v469, %v491
        %v506 = vmul.f32 %v470, %v491
        %v507 = vmul.f32 %v471, %v491
        %v508 = vmul.f32 %v472, %v491
        %509 = vset.pattern.permute.xlu0 1
        %510 = vperm.xlu0 %509, %v290
        %v511 = vpop.permute.xlu0 %510
        %513 = vset.pattern.permute.xlu0 1
        %514 = vperm.xlu0 %513, %v291
        %v515 = vpop.permute.xlu0 %514
        %517 = vset.pattern.permute.xlu0 1
        %518 = vperm.xlu0 %517, %v292
        %v519 = vpop.permute.xlu0 %518
        %521 = vset.pattern.permute.xlu0 1
        %522 = vperm.xlu0 %521, %v293
        %v523 = vpop.permute.xlu0 %522
        %v525 = vadd.f32 %v493, %v511
        %v526 = vadd.f32 %v494, %v511
        %v527 = vadd.f32 %v495, %v511
        %v528 = vadd.f32 %v496, %v511
        %v529 = vadd.f32 %v497, %v515
        %v530 = vadd.f32 %v498, %v515
        %v531 = vadd.f32 %v499, %v515
        %v532 = vadd.f32 %v500, %v515
        %v533 = vadd.f32 %v501, %v519
        %v534 = vadd.f32 %v502, %v519
        %v535 = vadd.f32 %v503, %v519
        %v536 = vadd.f32 %v504, %v519
        %v537 = vadd.f32 %v505, %v523
        %v538 = vadd.f32 %v506, %v523
        %v539 = vadd.f32 %v507, %v523
        %v540 = vadd.f32 %v508, %v523
        %v541 = vld [vmem:[%s264] sm:$0xff]
        %v542 = vld [vmem:[%s264 + $0x8] sm:$0xff]
        %v543 = vld [vmem:[%s264 + $0x10] sm:$0xff]
        %v544 = vld [vmem:[%s264 + $0x18] sm:$0xff]
        %545 = vset.pattern.permute.xlu0 2
        %546 = vperm.xlu0 %545, %v290
        %v547 = vpop.permute.xlu0 %546
        %549 = vset.pattern.permute.xlu0 2
        %550 = vperm.xlu0 %549, %v291
        %v551 = vpop.permute.xlu0 %550
        %553 = vset.pattern.permute.xlu0 2
        %554 = vperm.xlu0 %553, %v292
        %v555 = vpop.permute.xlu0 %554
        %557 = vset.pattern.permute.xlu0 2
        %558 = vperm.xlu0 %557, %v293
        %v559 = vpop.permute.xlu0 %558
        %vm561 = vcmask 261120
        %v563 = vsel %vm561, %v541, 0
        %v566 = vsel %vm561, %v542, 0
        %v569 = vsel %vm561, %v543, 0
        %v572 = vsel %vm561, %v544, 0
        %574 = vmatpush.msra.mxu0 0.0
        %575 = vmatpush.msra.mxu0 0.0
        %576 = vmatpush.msra.mxu0 0.0
        %577 = vmatpush.msra.mxu0 0.0
        %578 = vmatpush.msra.mxu0 0.0
        %579 = vmatpush.msra.mxu0 0.0
        %580 = vmatpush.msra.mxu0 0.0
        %581 = vmatpush.msra.mxu0 0.0
        %582 = vmatpush.msra.mxu0 0.0
        %583 = vmatpush.msra.mxu0 0.0
        %584 = vmatpush.msra.mxu0 0.0
        %585 = vmatpush.msra.mxu0 0.0
        %586 = vmatpush.msra.mxu0 %v537
        %587 = vmatpush.msra.mxu0 %v533
        %588 = vmatpush.msra.mxu0 %v529
        %589 = vmatpush.msra.mxu0 %v525
        %590 = vmatmul.f32.gmra.mxu0 %v563
        %v591 = vpop.f32.mrf.mxu0
        %v592 = vadd.f32 %v547, %v591
        %593 = vmatmul.f32.gmra.mxu0 %v566
        %v594 = vpop.f32.mrf.mxu0
        %v595 = vadd.f32 %v551, %v594
        %596 = vmatmul.f32.gmra.mxu0 %v569
        %v597 = vpop.f32.mrf.mxu0
        %v598 = vadd.f32 %v555, %v597
        %599 = vmatmul.f32.gmra.mxu0 %v572
        %v600 = vpop.f32.mrf.mxu0
        %v601 = vadd.f32 %v559, %v600
        %602 = vdwg.mxu0
        %603 = vmatpush.msra.mxu0 0.0
        %604 = vmatpush.msra.mxu0 0.0
        %605 = vmatpush.msra.mxu0 0.0
        %606 = vmatpush.msra.mxu0 0.0
        %607 = vmatpush.msra.mxu0 0.0
        %608 = vmatpush.msra.mxu0 0.0
        %609 = vmatpush.msra.mxu0 0.0
        %610 = vmatpush.msra.mxu0 0.0
        %611 = vmatpush.msra.mxu0 0.0
        %612 = vmatpush.msra.mxu0 0.0
        %613 = vmatpush.msra.mxu0 0.0
        %614 = vmatpush.msra.mxu0 0.0
        %615 = vmatpush.msra.mxu0 %v538
        %616 = vmatpush.msra.mxu0 %v534
        %617 = vmatpush.msra.mxu0 %v530
        %618 = vmatpush.msra.mxu0 %v526
        %619 = vmatmul.f32.gmra.mxu0 %v563
        %v620 = vpop.f32.mrf.mxu0
        %v621 = vadd.f32 %v547, %v620
        %622 = vmatmul.f32.gmra.mxu0 %v566
        %v623 = vpop.f32.mrf.mxu0
        %v624 = vadd.f32 %v551, %v623
        %625 = vmatmul.f32.gmra.mxu0 %v569
        %v626 = vpop.f32.mrf.mxu0
        %v627 = vadd.f32 %v555, %v626
        %628 = vmatmul.f32.gmra.mxu0 %v572
        %v629 = vpop.f32.mrf.mxu0
        %v630 = vadd.f32 %v559, %v629
        %631 = vdwg.mxu0
        %632 = vmatpush.msra.mxu0 0.0
        %633 = vmatpush.msra.mxu0 0.0
        %634 = vmatpush.msra.mxu0 0.0
        %635 = vmatpush.msra.mxu0 0.0
        %636 = vmatpush.msra.mxu0 0.0
        %637 = vmatpush.msra.mxu0 0.0
        %638 = vmatpush.msra.mxu0 0.0
        %639 = vmatpush.msra.mxu0 0.0
        %640 = vmatpush.msra.mxu0 0.0
        %641 = vmatpush.msra.mxu0 0.0
        %642 = vmatpush.msra.mxu0 0.0
        %643 = vmatpush.msra.mxu0 0.0
        %644 = vmatpush.msra.mxu0 %v539
        %645 = vmatpush.msra.mxu0 %v535
        %646 = vmatpush.msra.mxu0 %v531
        %647 = vmatpush.msra.mxu0 %v527
        %648 = vmatmul.f32.gmra.mxu0 %v563
        %v649 = vpop.f32.mrf.mxu0
        %v650 = vadd.f32 %v547, %v649
        %651 = vmatmul.f32.gmra.mxu0 %v566
        %v652 = vpop.f32.mrf.mxu0
        %v653 = vadd.f32 %v551, %v652
        %654 = vmatmul.f32.gmra.mxu0 %v569
        %v655 = vpop.f32.mrf.mxu0
        %v656 = vadd.f32 %v555, %v655
        %657 = vmatmul.f32.gmra.mxu0 %v572
        %v658 = vpop.f32.mrf.mxu0
        %v659 = vadd.f32 %v559, %v658
        %660 = vdwg.mxu0
        %661 = vmatpush.msra.mxu0 0.0
        %662 = vmatpush.msra.mxu0 0.0
        %663 = vmatpush.msra.mxu0 0.0
        %664 = vmatpush.msra.mxu0 0.0
        %665 = vmatpush.msra.mxu0 0.0
        %666 = vmatpush.msra.mxu0 0.0
        %667 = vmatpush.msra.mxu0 0.0
        %668 = vmatpush.msra.mxu0 0.0
        %669 = vmatpush.msra.mxu0 0.0
        %670 = vmatpush.msra.mxu0 0.0
        %671 = vmatpush.msra.mxu0 0.0
        %672 = vmatpush.msra.mxu0 0.0
        %673 = vmatpush.msra.mxu0 %v540
        %674 = vmatpush.msra.mxu0 %v536
        %675 = vmatpush.msra.mxu0 %v532
        %676 = vmatpush.msra.mxu0 %v528
        %677 = vmatmul.f32.gmra.mxu0 %v563
        %v678 = vpop.f32.mrf.mxu0
        %v679 = vadd.f32 %v547, %v678
        %680 = vmatmul.f32.gmra.mxu0 %v566
        %v681 = vpop.f32.mrf.mxu0
        %v682 = vadd.f32 %v551, %v681
        %683 = vmatmul.f32.gmra.mxu0 %v569
        %v684 = vpop.f32.mrf.mxu0
        %v685 = vadd.f32 %v555, %v684
        %686 = vmatmul.f32.gmra.mxu0 %v572
        %v687 = vpop.f32.mrf.mxu0
        %v688 = vadd.f32 %v559, %v687
        %689 = vdwg.mxu0
        %v690 = vmax.f32 %v592, 0.0
        %v691 = vmax.f32 %v621, 0.0
        %v692 = vmax.f32 %v650, 0.0
        %v693 = vmax.f32 %v679, 0.0
        %v694 = vmax.f32 %v595, 0.0
        %v695 = vmax.f32 %v624, 0.0
        %v696 = vmax.f32 %v653, 0.0
        %v697 = vmax.f32 %v682, 0.0
        %v698 = vmax.f32 %v598, 0.0
        %v699 = vmax.f32 %v627, 0.0
        %v700 = vmax.f32 %v656, 0.0
        %v701 = vmax.f32 %v685, 0.0
        %v702 = vmax.f32 %v601, 0.0
        %v703 = vmax.f32 %v630, 0.0
        %v704 = vmax.f32 %v659, 0.0
        %v705 = vmax.f32 %v688, 0.0
        %v706 = vadd.f32 %v274, %v690
        %v707 = vadd.f32 %v275, %v691
        %v708 = vadd.f32 %v276, %v692
        %v709 = vadd.f32 %v277, %v693
        %v710 = vadd.f32 %v278, %v694
        %v711 = vadd.f32 %v279, %v695
        %v712 = vadd.f32 %v280, %v696
        %v713 = vadd.f32 %v281, %v697
        %v714 = vadd.f32 %v282, %v698
        %v715 = vadd.f32 %v283, %v699
        %v716 = vadd.f32 %v284, %v700
        %v717 = vadd.f32 %v285, %v701
        %v718 = vadd.f32 %v286, %v702
        %v719 = vadd.f32 %v287, %v703
        %v720 = vadd.f32 %v288, %v704
        %v721 = vadd.f32 %v289, %v705
        %722 = vst [vmem:[%s257] sm:$0xff] %v706
        %723 = vst [vmem:[%s257 + $0x8] sm:$0xff] %v707
        %724 = vst [vmem:[%s257 + $0x10] sm:$0xff] %v708
        %725 = vst [vmem:[%s257 + $0x18] sm:$0xff] %v709
        %726 = vst [vmem:[%s257 + $0x20] sm:$0xff] %v710
        %727 = vst [vmem:[%s257 + $0x28] sm:$0xff] %v711
        %728 = vst [vmem:[%s257 + $0x30] sm:$0xff] %v712
        %729 = vst [vmem:[%s257 + $0x38] sm:$0xff] %v713
        %730 = vst [vmem:[%s257 + $0x40] sm:$0xff] %v714
        %731 = vst [vmem:[%s257 + $0x48] sm:$0xff] %v715
        %732 = vst [vmem:[%s257 + $0x50] sm:$0xff] %v716
        %733 = vst [vmem:[%s257 + $0x58] sm:$0xff] %v717
        %734 = vst [vmem:[%s257 + $0x60] sm:$0xff] %v718
        %735 = vst [vmem:[%s257 + $0x68] sm:$0xff] %v719
        %736 = vst [vmem:[%s257 + $0x70] sm:$0xff] %v720
        %737 = vst [vmem:[%s257 + $0x78] sm:$0xff] %v721
        %s738 = sand.u32 %s135, 1
        %s739 = scalar_lea.sflag [#allocation6], %s738
        %s740 = sand.u32 %s135, 1
        %s741 = smul.addr %s740, 128
        %s742 = scalar_lea.vmem [#allocation7], %s741
        // Predicated region
        $region37: #{tpu_custom_call.1} parent=31 // pred_check
          %p743 = pneg %p145
        $region38: #{tpu_custom_call.1} parent=31 // pred_check_branch
          %745 = sbr.rel (%p743) target = $region40
        $region39: #{tpu_custom_call.1} parent=31 // pred_region
          %s746 = smul.u32 4, %s34
          %748 = vsyncadd %s739, 0
          %s749 = smul.addr %s33, 64
          %s750 = sadd.s32 %s746, %s749
          %s751 = smul.addr %s750, 8
          %s752 = scalar_lea.hbm %s4, %s751
          %s753 = sshll.u32 %s742, 4
          %s754 = int_to_ptr.vmem [resolvable:$true] %s753
          %s755 = sshll.u32 %s752, 4
          %s756 = int_to_ptr.hbm [resolvable:$true] %s755
          %761 = dma.vmem_to_hbm [thread:$0]  %s754, 2048, %s756, %s739, 512, 2048, 32
        $region40: #{tpu_custom_call.1} parent=31 // pred_fallthru
          _
      $region32: #{tpu_custom_call.1} parent=5 // pred_fallthru
        _
      %p762 = scmp.le.s32.totalorder 2, %s24
      // Predicated region
      $region41: #{tpu_custom_call.1} parent=5 // pred_check
        %p763 = pneg %p762
      $region42: #{tpu_custom_call.1} parent=5 // pred_check_branch
        %765 = sbr.rel (%p763) target = $region44
      $region43: #{tpu_custom_call.1} parent=5 // pred_region
        %s766 = ssub.s32 %s24, 2
        // Predicated region
        $region45: #{tpu_custom_call.1} parent=43 // pred_check
          %p767 = pneg %p151
        $region46: #{tpu_custom_call.1} parent=43 // pred_check_branch
          %769 = sbr.rel (%p767) target = $region48
        $region47: #{tpu_custom_call.1} parent=43 // pred_region
          %s770 = sand.u32 %s136, 1
          %s771 = scalar_lea.sflag [#allocation6], %s770
          %s772 = sand.u32 %s136, 1
          %s773 = smul.addr %s772, 128
          %s774 = scalar_lea.vmem [#allocation7], %s773
          %776 = dma.done %s771, 2048
        $region48: #{tpu_custom_call.1} parent=43 // pred_fallthru
          _
      $region44: #{tpu_custom_call.1} parent=5 // pred_fallthru
        _
    $region6: #{tpu_custom_call.1} parent=1 // loop_footer
      %s28 = sadd.s32 1, %s24
    $region7: #{tpu_custom_call.1} parent=1 // loop_footer_branch
      %23 = sbr.rel target = $region3
    $region8: #{tpu_custom_call.1} parent=1 // loop_exit
      _
    %777 = vsyncpa [#allocation5], 1
    %s778 = scalar_lea.sflag [#allocation5], 1
    %779 = vsyncpa %s778, 1
    %780 = vsyncpa [#allocation6], 1
    %s781 = scalar_lea.sflag [#allocation6], 1
    %782 = vsyncpa %s781, 1

</llo_original>
